<compile_context>
chip_gen: v5e
topology: v5e:2x2
jax: 0.10.0
libtpu: 0.0.40
codegen_flags: <defaults>
</compile_context>

<pallas_src>
import functools

import jax
import jax.numpy as jnp
import numpy as np
from jax.experimental import pallas as pl
from jax.experimental.pallas import tpu as pltpu


TILE_B = 8              # batch rows per grid step (one f32 sublane group)
SUB_V = 512             # register-resident vocab sub-chunk (8x512 i32 = 4 vregs)
_STATIC_UNROLL_MAX = 32  # short position chunks: static unroll, no roll trick


def _round_up(x, m):
    return ((x + m - 1) // m) * m


def _default_unroll():
    # Smaller unroll on v5e (single store slot, slower VALU); 8 elsewhere.
    try:
        kind = jax.devices()[0].device_kind.lower()
        if "v5 lite" in kind or "v5e" in kind or "v5litepod" in kind:
            return 4
    except Exception:
        pass
    return 8


def _choose_vocab_tiling(V, n_b):
    """Pick (tile_v, sub_v, n_v, V_pad): lane-dense tiles, >=2 parallel steps."""
    V128 = _round_up(V, 128)
    if V128 <= SUB_V:
        tile_v = V128
        # Split the single tile if the batch axis alone can't feed 2 TCs (v7x).
        if n_b < 2 and tile_v >= 256:
            tile_v = _round_up(tile_v // 2, 128)
        sub_v = tile_v
        n_v = pl.cdiv(V128, tile_v)
    else:
        n_sub = pl.cdiv(V128, SUB_V)
        subs_per_tile = min(8, n_sub)                 # tile_v <= 4096 lanes
        if n_b * pl.cdiv(n_sub, subs_per_tile) < 2:
            subs_per_tile = max(1, pl.cdiv(n_sub, 2))
        n_v = pl.cdiv(n_sub, subs_per_tile)
        subs_per_tile = pl.cdiv(n_sub, n_v)           # rebalance tile widths
        tile_v = subs_per_tile * SUB_V
        sub_v = SUB_V
    V_pad = n_v * tile_v
    return tile_v, sub_v, n_v, V_pad


def _bow_kernel(hits_ref, tokens_ref, weights_ref, out_ref, *,
                n_v, tile_v, sub_v, seq_len, cumulative_term_frequency, unroll):
    # hits_ref   : SMEM (n_b * n_v,) int32   scalar-prefetched tile-hit flags
    # tokens_ref : (n_chunks, TILE_B, 128) int32   whole (padded) sequence
    # weights_ref: (1, tile_v) float32             current vocab tile
    # out_ref    : (TILE_B, tile_v) float32
    b = pl.program_id(0)          # batch-block index ("parallel")
    j = pl.program_id(1)          # vocab-tile index  ("parallel")
    hit = hits_ref[b * n_v + j]

    tile_b = out_ref.shape[0]
    n_chunks = tokens_ref.shape[0]
    n_sub = tile_v // sub_v

    @pl.when(hit == 0)
    def _():
        # No token of this batch block falls into this vocab tile.
        out_ref[...] = jnp.zeros(out_ref.shape, out_ref.dtype)

    @pl.when(hit != 0)
    def _():
        base = j * tile_v
        for sub in range(n_sub):                      # static, <= 8
            v0 = sub * sub_v
            # Vocab ids covered by this sub-chunk, hoisted out of the loops.
            vocab_ids = (base + v0 +
                         jax.lax.broadcasted_iota(jnp.int32, (1, sub_v), 1))
            counts = jnp.zeros((tile_b, sub_v), jnp.int32)   # register-resident

            for c in range(n_chunks):                 # static, small
                n_real = min(128, seq_len - c * 128)
                if n_real <= 0:
                    continue
                tok_chunk = tokens_ref[c]             # (TILE_B, 128), one vreg

                if n_real <= _STATIC_UNROLL_MAX:
                    # Short chunk: small static unroll, static lane slices.
                    for q in range(n_real):
                        col = tok_chunk[:, q:q + 1]           # (TILE_B, 1)
                        counts = counts + (col == vocab_ids).astype(jnp.int32)
                else:
                    # Full 128-lane chunk: rotate-and-peek.  128 single-lane
                    # rotations visit every original lane exactly once (the
                    # rotation direction is irrelevant); padded (-1) lanes
                    # match no vocab id and contribute nothing.
                    def body(_, carry, vocab_ids=vocab_ids):
                        cnt, tok = carry
                        col = tok[:, 0:1]                     # (TILE_B, 1)
                        cnt = cnt + (col == vocab_ids).astype(jnp.int32)
                        tok = pltpu.roll(tok, shift=1, axis=1)
                        return cnt, tok
                    counts, _ = jax.lax.fori_loop(
                        0, 128, body, (counts, tok_chunk), unroll=unroll)

            w = weights_ref[:, v0:v0 + sub_v]          # (1, sub_v)
            if cumulative_term_frequency:
                res = counts.astype(jnp.float32) * w
            else:
                # only presence matters (last write == weights[token])
                res = jnp.where(counts > 0, w, jnp.float32(0.0))
            out_ref[:, v0:v0 + sub_v] = res


def bow_sentence_embedding(token_ids, weights, *, cumulative_term_frequency=True):
    """token_ids: (B, S) int32 (pad = -1); weights: (V,) float32 -> (B, V) f32.

    Token ids outside [0, V) (including the -1 padding id) match no real vocab
    column and contribute nothing, matching the reference's skipping of padding.
    """
    B, S = token_ids.shape
    V = weights.shape[0]
    token_ids = token_ids.astype(jnp.int32)

    # Batch: 8-row blocks (full f32 sublane group), grid axis over blocks.
    B_pad = _round_up(max(B, 1), TILE_B)
    n_b = B_pad // TILE_B

    tile_v, sub_v, n_v, V_pad = _choose_vocab_tiling(V, n_b)

    # Sequence: pad to a multiple of 128 lanes and lay out as
    # (n_chunks, B_pad, 128) so the kernel walks exact one-vreg chunks.
    S_pad = _round_up(max(S, 1), 128)
    n_chunks = S_pad // 128
    tok = jnp.pad(token_ids, ((0, B_pad - B), (0, S_pad - S)),
                  constant_values=-1)
    tok3d = jnp.transpose(tok.reshape(B_pad, n_chunks, 128), (1, 0, 2))

    weights2d = jnp.pad(weights.astype(jnp.float32),
                        (0, V_pad - V)).reshape(1, V_pad)

    # Per-(batch-block, vocab-tile) hit flags for scalar-prefetch tile skipping.
    valid = (tok >= 0) & (tok < V)
    tile_of = jnp.where(valid, tok // tile_v, -1).reshape(n_b, TILE_B * S_pad)
    hits = (tile_of[:, :, None] ==
            jnp.arange(n_v, dtype=jnp.int32)).any(axis=1)
    hits_flat = hits.reshape(-1).astype(jnp.int32)        # 1-D: cheap in SMEM

    unroll = _default_unroll()
    kernel = functools.partial(
        _bow_kernel, n_v=n_v, tile_v=tile_v, sub_v=sub_v, seq_len=S,
        cumulative_term_frequency=cumulative_term_frequency, unroll=unroll)

    # Blocks are tiny (tokens: n_chunks*4KiB, weights: tile_v*4B, out: <=128KiB
    # each, double-buffered); clamp well under v7x's 64 MiB/TC.
    vmem_needed = 2 * (n_chunks * TILE_B * 128 * 4 + tile_v * 4
                       + TILE_B * tile_v * 4)
    vmem_limit = int(min(max(2 * vmem_needed + (2 << 20), 8 << 20), 48 << 20))

    cost = pl.CostEstimate(
        flops=2 * B_pad * S_pad * V_pad,        # compares counted as flops
        transcendentals=0,
        bytes_accessed=4 * (B_pad * V_pad + V_pad + B_pad * S_pad + n_b * n_v))

    out = pl.pallas_call(
        kernel,
        out_shape=jax.ShapeDtypeStruct((B_pad, V_pad), jnp.float32),
        grid_spec=pltpu.PrefetchScalarGridSpec(
            num_scalar_prefetch=1,
            grid=(n_b, n_v),
            in_specs=[
                pl.BlockSpec((n_chunks, TILE_B, 128),
                             lambda b, j, hits: (0, b, 0)),   # token block
                pl.BlockSpec((1, tile_v),
                             lambda b, j, hits: (0, j)),      # vocab tile
            ],
            out_specs=pl.BlockSpec((TILE_B, tile_v),
                                   lambda b, j, hits: (b, j)),
        ),
        compiler_params=pltpu.CompilerParams(
            dimension_semantics=("parallel", "parallel"),
            vmem_limit_bytes=vmem_limit),
        cost_estimate=cost,
    )(hits_flat, tok3d, weights2d)

    return out[:B, :V]


def bow_forward(features):
    """BoW.forward() is the identity on the features dict."""
    return features


def _reference(token_ids, weights, cumulative=True):
    B, S = token_ids.shape
    V = weights.shape[0]
    out = np.zeros((B, V), dtype=np.float32)
    for b in range(B):
        for s in range(S):
            t = int(token_ids[b, s])
            if t < 0 or t >= V:
                continue
            if cumulative:
                out[b, t] += float(weights[t])
            else:
                out[b, t] = float(weights[t])
    return out


if __name__ == "__main__":
    key = jax.random.PRNGKey(0)
    k_tok, k_w, k_pad, k_tok2, k_w2, k_pad2 = jax.random.split(key, 6)

    # ---- case 1: tiny shapes (B=2, S=8, V=256); tokens confined to [0, 100)
    # so the second vocab tile is a guaranteed miss (exercises the skip path).
    B, S, V = 2, 8, 256
    token_ids = jax.random.randint(k_tok, (B, S), 0, 100, dtype=jnp.int32)
    pad_mask = jax.random.bernoulli(k_pad, p=0.25, shape=(B, S))
    token_ids = jnp.where(pad_mask, jnp.int32(-1), token_ids)
    weights = jax.random.uniform(k_w, (V,), dtype=jnp.float32,
                                 minval=0.5, maxval=2.0)

    emb = jax.block_until_ready(
        bow_sentence_embedding(token_ids, weights,
                               cumulative_term_frequency=True))
    features = bow_forward({"sentence_embedding": emb})   # forward() = identity
    ref = _reference(np.asarray(token_ids), np.asarray(weights), cumulative=True)
    np.testing.assert_allclose(np.asarray(features["sentence_embedding"]), ref,
                               rtol=1e-6, atol=1e-6)

    emb_nc = jax.block_until_ready(
        bow_sentence_embedding(token_ids, weights,
                               cumulative_term_frequency=False))
    ref_nc = _reference(np.asarray(token_ids), np.asarray(weights),
                        cumulative=False)
    np.testing.assert_allclose(np.asarray(emb_nc), ref_nc, rtol=1e-6, atol=1e-6)

    # ---- case 2: larger shapes (B=10, S=200, V=1000) exercising multiple
    # batch blocks, multiple position chunks and the fori_loop/roll path.
    B2, S2, V2 = 10, 200, 1000
    token_ids2 = jax.random.randint(k_tok2, (B2, S2), 0, V2, dtype=jnp.int32)
    pad_mask2 = jax.random.bernoulli(k_pad2, p=0.2, shape=(B2, S2))
    token_ids2 = jnp.where(pad_mask2, jnp.int32(-1), token_ids2)
    weights2 = jax.random.uniform(k_w2, (V2,), dtype=jnp.float32,
                                  minval=0.5, maxval=2.0)

    emb2 = jax.block_until_ready(
        bow_sentence_embedding(token_ids2, weights2,
                               cumulative_term_frequency=True))
    ref2 = _reference(np.asarray(token_ids2), np.asarray(weights2),
                      cumulative=True)
    np.testing.assert_allclose(np.asarray(emb2), ref2, rtol=1e-6, atol=1e-6)

    print("KERNEL_OK")
</pallas_src>

<mosaic_0001>
module attributes {stable_mosaic.version = 11 : i64} {
  func.func @_bow_kernel(%arg0: i32, %arg1: i32, %arg2: memref<2xi32, #tpu.memory_space<smem>>, %arg3: memref<1x8x128xi32, #tpu.memory_space<vmem>>, %arg4: memref<1x128xf32, #tpu.memory_space<vmem>>, %arg5: memref<8x128xf32, #tpu.memory_space<vmem>>) attributes {dimension_semantics = [#tpu.dimension_semantics<parallel>, #tpu.dimension_semantics<parallel>], iteration_bounds = array<i64: 1, 2>, scalar_prefetch = 1 : i64, scratch_operands = 0 : i64, tpu.core_type = #tpu.core_type<tc>, window_params = [{transform_indices = @transform_0, window_bounds = array<i64: 1, 8, 128>}, {transform_indices = @transform_1, window_bounds = array<i64: 1, 128>}, {transform_indices = @transform_2, window_bounds = array<i64: 8, 128>}]} {
    %c2_i32 = arith.constant 2 : i32
    %0 = arith.muli %arg0, %c2_i32 : i32
    %1 = arith.addi %0, %arg1 : i32
    %2 = arith.index_cast %1 : i32 to index
    %3 = memref.load %arg2[%2] : memref<2xi32, #tpu.memory_space<smem>>
    %c0_i32 = arith.constant 0 : i32
    %4 = arith.cmpi eq, %3, %c0_i32 : i32
    %5 = arith.extui %4 : i1 to i32
    %c0_i32_0 = arith.constant 0 : i32
    %6 = arith.cmpi ne, %5, %c0_i32_0 : i32
    scf.if %6 {
      %cst = arith.constant 0.000000e+00 : f32
      %10 = vector.broadcast %cst : f32 to vector<8x128xf32>
      %c0 = arith.constant 0 : index
      %c0_3 = arith.constant 0 : index
      %11 = vector.load %arg5[%c0, %c0_3] : memref<8x128xf32, #tpu.memory_space<vmem>>, vector<8x128xf32>
      tpu.vector_store %arg5[%c0, %c0_3], %10 {strides = array<i32>} : memref<8x128xf32, #tpu.memory_space<vmem>>, vector<8x128xf32>,
    } else {
    }
    %c0_i32_1 = arith.constant 0 : i32
    %7 = arith.cmpi ne, %3, %c0_i32_1 : i32
    %8 = arith.extui %7 : i1 to i32
    %c0_i32_2 = arith.constant 0 : i32
    %9 = arith.cmpi ne, %8, %c0_i32_2 : i32
    scf.if %9 {
      %c128_i32 = arith.constant 128 : i32
      %10 = arith.muli %arg1, %c128_i32 : i32
      %c0_i32_3 = arith.constant 0 : i32
      %11 = arith.addi %10, %c0_i32_3 : i32
      %12 = tpu.iota {dimensions = array<i32: 1>} : vector<1x128xi32>
      %13 = vector.broadcast %11 : i32 to vector<1x128xi32>
      %14 = arith.addi %13, %12 : vector<1x128xi32>
      %c0_i32_4 = arith.constant 0 : i32
      %15 = vector.broadcast %c0_i32_4 : i32 to vector<8x128xi32>
      %c0 = arith.constant 0 : index
      %c0_5 = arith.constant 0 : index
      %c0_6 = arith.constant 0 : index
      %16 = vector.load %arg3[%c0, %c0_5, %c0_6] : memref<1x8x128xi32, #tpu.memory_space<vmem>>, vector<1x8x128xi32>
      %17 = vector.shape_cast %16 : vector<1x8x128xi32> to vector<8x128xi32>
      %18 = vector.extract_strided_slice %17 {offsets = [0, 0], sizes = [8, 1], strides = [1, 1]} : vector<8x128xi32> to vector<8x1xi32>
      %19 = vector.broadcast %18 : vector<8x1xi32> to vector<8x128xi32>
      %20 = vector.broadcast %14 : vector<1x128xi32> to vector<8x128xi32>
      %21 = arith.cmpi eq, %19, %20 : vector<8x128xi32>
      %22 = arith.extui %21 : vector<8x128xi1> to vector<8x128xi32>
      %23 = arith.addi %15, %22 : vector<8x128xi32>
      %24 = vector.extract_strided_slice %17 {offsets = [0, 1], sizes = [8, 1], strides = [1, 1]} : vector<8x128xi32> to vector<8x1xi32>
      %25 = vector.broadcast %24 : vector<8x1xi32> to vector<8x128xi32>
      %26 = vector.broadcast %14 : vector<1x128xi32> to vector<8x128xi32>
      %27 = arith.cmpi eq, %25, %26 : vector<8x128xi32>
      %28 = arith.extui %27 : vector<8x128xi1> to vector<8x128xi32>
      %29 = arith.addi %23, %28 : vector<8x128xi32>
      %30 = vector.extract_strided_slice %17 {offsets = [0, 2], sizes = [8, 1], strides = [1, 1]} : vector<8x128xi32> to vector<8x1xi32>
      %31 = vector.broadcast %30 : vector<8x1xi32> to vector<8x128xi32>
      %32 = vector.broadcast %14 : vector<1x128xi32> to vector<8x128xi32>
      %33 = arith.cmpi eq, %31, %32 : vector<8x128xi32>
      %34 = arith.extui %33 : vector<8x128xi1> to vector<8x128xi32>
      %35 = arith.addi %29, %34 : vector<8x128xi32>
      %36 = vector.extract_strided_slice %17 {offsets = [0, 3], sizes = [8, 1], strides = [1, 1]} : vector<8x128xi32> to vector<8x1xi32>
      %37 = vector.broadcast %36 : vector<8x1xi32> to vector<8x128xi32>
      %38 = vector.broadcast %14 : vector<1x128xi32> to vector<8x128xi32>
      %39 = arith.cmpi eq, %37, %38 : vector<8x128xi32>
      %40 = arith.extui %39 : vector<8x128xi1> to vector<8x128xi32>
      %41 = arith.addi %35, %40 : vector<8x128xi32>
      %42 = vector.extract_strided_slice %17 {offsets = [0, 4], sizes = [8, 1], strides = [1, 1]} : vector<8x128xi32> to vector<8x1xi32>
      %43 = vector.broadcast %42 : vector<8x1xi32> to vector<8x128xi32>
      %44 = vector.broadcast %14 : vector<1x128xi32> to vector<8x128xi32>
      %45 = arith.cmpi eq, %43, %44 : vector<8x128xi32>
      %46 = arith.extui %45 : vector<8x128xi1> to vector<8x128xi32>
      %47 = arith.addi %41, %46 : vector<8x128xi32>
      %48 = vector.extract_strided_slice %17 {offsets = [0, 5], sizes = [8, 1], strides = [1, 1]} : vector<8x128xi32> to vector<8x1xi32>
      %49 = vector.broadcast %48 : vector<8x1xi32> to vector<8x128xi32>
      %50 = vector.broadcast %14 : vector<1x128xi32> to vector<8x128xi32>
      %51 = arith.cmpi eq, %49, %50 : vector<8x128xi32>
      %52 = arith.extui %51 : vector<8x128xi1> to vector<8x128xi32>
      %53 = arith.addi %47, %52 : vector<8x128xi32>
      %54 = vector.extract_strided_slice %17 {offsets = [0, 6], sizes = [8, 1], strides = [1, 1]} : vector<8x128xi32> to vector<8x1xi32>
      %55 = vector.broadcast %54 : vector<8x1xi32> to vector<8x128xi32>
      %56 = vector.broadcast %14 : vector<1x128xi32> to vector<8x128xi32>
      %57 = arith.cmpi eq, %55, %56 : vector<8x128xi32>
      %58 = arith.extui %57 : vector<8x128xi1> to vector<8x128xi32>
      %59 = arith.addi %53, %58 : vector<8x128xi32>
      %60 = vector.extract_strided_slice %17 {offsets = [0, 7], sizes = [8, 1], strides = [1, 1]} : vector<8x128xi32> to vector<8x1xi32>
      %61 = vector.broadcast %60 : vector<8x1xi32> to vector<8x128xi32>
      %62 = vector.broadcast %14 : vector<1x128xi32> to vector<8x128xi32>
      %63 = arith.cmpi eq, %61, %62 : vector<8x128xi32>
      %64 = arith.extui %63 : vector<8x128xi1> to vector<8x128xi32>
      %65 = arith.addi %59, %64 : vector<8x128xi32>
      %c0_7 = arith.constant 0 : index
      %c0_8 = arith.constant 0 : index
      %66 = vector.load %arg4[%c0_7, %c0_8] : memref<1x128xf32, #tpu.memory_space<vmem>>, vector<1x128xf32>
      %67 = arith.sitofp %65 : vector<8x128xi32> to vector<8x128xf32>
      %68 = vector.broadcast %66 : vector<1x128xf32> to vector<8x128xf32>
      %69 = arith.mulf %67, %68 : vector<8x128xf32>
      %c0_9 = arith.constant 0 : index
      %c0_10 = arith.constant 0 : index
      %70 = vector.load %arg5[%c0_9, %c0_10] : memref<8x128xf32, #tpu.memory_space<vmem>>, vector<8x128xf32>
      tpu.vector_store %arg5[%c0_9, %c0_10], %69 {strides = array<i32>} : memref<8x128xf32, #tpu.memory_space<vmem>>, vector<8x128xf32>,
    } else {
    }
    return
  }
  func.func @transform_0(%arg0: i32, %arg1: i32, %arg2: memref<2xi32, #tpu.memory_space<smem>>) -> (i32, i32, i32) {
    %c0_i32 = arith.constant 0 : i32
    %c0_i32_0 = arith.constant 0 : i32
    %c0_i32_1 = arith.constant 0 : i32
    return %c0_i32, %arg0, %c0_i32_0 : i32, i32, i32
  }
  func.func @transform_1(%arg0: i32, %arg1: i32, %arg2: memref<2xi32, #tpu.memory_space<smem>>) -> (i32, i32) {
    %c0_i32 = arith.constant 0 : i32
    %c0_i32_0 = arith.constant 0 : i32
    return %c0_i32, %arg1 : i32, i32
  }
  func.func @transform_2(%arg0: i32, %arg1: i32, %arg2: memref<2xi32, #tpu.memory_space<smem>>) -> (i32, i32) {
    %c0_i32 = arith.constant 0 : i32
    return %arg0, %arg1 : i32, i32
  }
}

</mosaic_0001>

<llo_original>
// kernel: tpu_custom_call.1
$region0: #{tpu_custom_call.1}
  #allocation0 [shape = 'u32[]', space=smem, size = 0x4, offset = 0x4, fixed_abs, tag = 'smem constant byte address 0x4 - core index']
  #allocation1 [shape = 'u32[72,128]{1,0:T(1,128)}', space=vmem, size = 0x9000, scoped, tag = 'internal scratch']
  #allocation2 [shape = 's32[1]{0}', space=sflag, size = 0x4, scoped, tag = 'scoped memory for tpu_custom_call.1']
  #allocation3 [shape = 'u8[512]{0}', space=smem, size = 0x200, scoped, tag = 'prefetched SMEM operand 0']
  %s0 = inlined_call_operand.hbm [shape: s32[2], index: 0, kind: input, shape index: {}]
  %s1 = inlined_call_operand.hbm [shape: s32[1,8,128], index: 1, kind: input, shape index: {}]
  %s2 = inlined_call_operand.hbm [shape: f32[1,256], index: 2, kind: input, shape index: {}]
  %s3 = inlined_call_operand.hbm [shape: f32[8,256], index: 3, kind: output, shape index: {}]
  %s4 = sld [smem:[#allocation0]]
  $region57: #{tpu_custom_call.1} parent=0
    _
  %s6 = ssub.s32 1, %s4
  %s7 = scalar_select 0, %s6, %s4
  %s9 = sshll.u32 %s0, 4
  %s10 = int_to_ptr.hbm [resolvable:$true] %s9
  %12 = dma.hbm_to_smem %s10, 16, [#allocation3], [#allocation2]
  %14 = dma.done [#allocation2], 16
  %15 = sfence
  $region1: #{tpu_custom_call.1} parent=0
    #allocation4 [shape = 'u8[4096]{0}', space=vmem, size = 0x1000, scoped, tag = 'input window, operand 1, single buffered']
    #allocation5 [shape = 's32[2]{0}', space=sflag, size = 0x8, scoped, tag = 'scoped memory for tpu_custom_call.1']
    #allocation6 [shape = 's32[2]{0}', space=sflag, size = 0x8, scoped, tag = 'scoped memory for tpu_custom_call.1']
    #allocation7 [shape = 'u8[1024]{0}', space=vmem, size = 0x400, scoped, tag = 'input window, operand 2']
    #allocation8 [shape = 's32[2]{0}', space=sflag, size = 0x8, scoped, tag = 'scoped memory for tpu_custom_call.1']
    #allocation9 [shape = 'u8[8192]{0}', space=vmem, size = 0x2000, scoped, tag = 'output window, operand 0']
    %16 = vsyncpa [#allocation5], 0
    %17 = vsyncpa [#allocation8], 0
    %s18 = scalar_lea.sflag [#allocation8], 1
    %19 = vsyncpa %s18, 0
    %20 = vsyncpa [#allocation6], 0
    %s21 = scalar_lea.sflag [#allocation6], 1
    %22 = vsyncpa %s21, 0
    loop: start=0, step=1, limit=4
    $region2: #{tpu_custom_call.1} parent=1 // loop_pre_header
      _
    $region3: #{tpu_custom_call.1} parent=1 // loop_header
      %s24 = sphi 0, %s28
      %p25 = scmp.ge.s32.totalorder %s24, 4
      %s31 = sphi 0, %s43
      %s32 = sphi 0, %s39
      %s33 = sphi 0, %s31
      %s34 = sphi 0, %s32
      %s35 = sphi 0, %s33
      %s36 = sphi 0, %s34
      %s46 = sphi 0, %s48
      %s49 = sphi 0, %s46
      %s50 = sphi 0, %s49
      %s66 = sphi 0, %s50
      %s72 = sphi 0, %s74
      %s75 = sphi 0, %s72
      %s76 = sphi 0, %s75
      %s92 = sphi 0, %s76
      %s100 = sphi 0, %s102
      %s103 = sphi 0, %s100
      %s104 = sphi 0, %s103
      %s120 = sphi 0, %s104
    $region4: #{tpu_custom_call.1} parent=1 // loop_header_branch
      %27 = sbr.rel (%p25) target = $region8
    $region5: #{tpu_custom_call.1} parent=1 // loop_body
      %s29 = ssub.s32 %s24, 1
      %s30 = ssub.s32 %s24, 2
      %s37 = sadd.s32 1, %s32
      %p38 = scmp.ge.s32.totalorder %s37, 2
      %s39 = scalar_select %p38, 0, %s37
      %s40 = sadd.s32 1, %s31
      %s41 = scalar_select %p38, %s40, %s31
      %p42 = scmp.ge.s32.totalorder %s41, 1
      %s43 = scalar_select %p42, 0, %s41
      %s44 = ssub.s32 %s31, %s43
      %p45 = scmp.eq.s32.totalorder %s44, 0
      %s47 = sadd.s32 %s46, 1
      %s48 = scalar_select %p45, %s46, %s47
      %p51 = pneg %p45
      %p52 = scmp.eq.s32.totalorder %s24, 1
      %p53 = por %p51, %p52
      %p54 = scmp.ne.s32.totalorder %s46, %s49
      %p55 = scmp.eq.s32.totalorder %s24, 0
      %p56 = por %p54, %p55
      %p57 = scmp.ne.s32.totalorder %s46, %s49
      %p58 = scmp.eq.s32.totalorder %s29, 1
      %p59 = por %p57, %p58
      %p60 = scmp.ne.s32.totalorder %s49, %s50
      %p61 = scmp.eq.s32.totalorder %s29, 0
      %p62 = por %p60, %p61
      %p63 = scmp.ne.s32.totalorder %s49, %s50
      %p64 = scmp.eq.s32.totalorder %s30, 1
      %p65 = por %p63, %p64
      %p67 = scmp.ne.s32.totalorder %s50, %s66
      %p68 = scmp.eq.s32.totalorder %s30, 0
      %p69 = por %p67, %p68
      %s70 = ssub.s32 %s32, %s39
      %p71 = scmp.eq.s32.totalorder %s70, 0
      %s73 = sadd.s32 %s72, 1
      %s74 = scalar_select %p71, %s72, %s73
      %p77 = pneg %p71
      %p78 = scmp.eq.s32.totalorder %s24, 1
      %p79 = por %p77, %p78
      %p80 = scmp.ne.s32.totalorder %s72, %s75
      %p81 = scmp.eq.s32.totalorder %s24, 0
      %p82 = por %p80, %p81
      %p83 = scmp.ne.s32.totalorder %s72, %s75
      %p84 = scmp.eq.s32.totalorder %s29, 1
      %p85 = por %p83, %p84
      %p86 = scmp.ne.s32.totalorder %s75, %s76
      %p87 = scmp.eq.s32.totalorder %s29, 0
      %p88 = por %p86, %p87
      %p89 = scmp.ne.s32.totalorder %s75, %s76
      %p90 = scmp.eq.s32.totalorder %s30, 1
      %p91 = por %p89, %p90
      %p93 = scmp.ne.s32.totalorder %s76, %s92
      %p94 = scmp.eq.s32.totalorder %s30, 0
      %p95 = por %p93, %p94
      %s96 = ssub.s32 %s31, %s43
      %s97 = ssub.s32 %s32, %s39
      %s98 = sor.u32 %s96, %s97
      %p99 = scmp.eq.s32.totalorder %s98, 0
      %s101 = sadd.s32 %s100, 1
      %s102 = scalar_select %p99, %s100, %s101
      %p105 = pneg %p99
      %p106 = scmp.eq.s32.totalorder %s24, 1
      %p107 = por %p105, %p106
      %p108 = scmp.ne.s32.totalorder %s100, %s103
      %p109 = scmp.eq.s32.totalorder %s24, 0
      %p110 = por %p108, %p109
      %p111 = scmp.ne.s32.totalorder %s100, %s103
      %p112 = scmp.eq.s32.totalorder %s29, 1
      %p113 = por %p111, %p112
      %p114 = scmp.ne.s32.totalorder %s103, %s104
      %p115 = scmp.eq.s32.totalorder %s29, 0
      %p116 = por %p114, %p115
      %p117 = scmp.ne.s32.totalorder %s103, %s104
      %p118 = scmp.eq.s32.totalorder %s30, 1
      %p119 = por %p117, %p118
      %p121 = scmp.ne.s32.totalorder %s104, %s120
      %p122 = scmp.eq.s32.totalorder %s30, 0
      %p123 = por %p121, %p122
      %p124 = scmp.le.s32.totalorder 1, %s24
      %p125 = scmp.lt.s32.totalorder %s24, 3
      %p126 = pnand %p124, %p125
      %p127 = pneg %p126
      // Predicated region
      $region9: #{tpu_custom_call.1} parent=5 // pred_check
        _
      $region10: #{tpu_custom_call.1} parent=5 // pred_check_branch
        %129 = sbr.rel (%p126) target = $region12
      $region11: #{tpu_custom_call.1} parent=5 // pred_region
        %s130 = ssub.s32 %s24, 1
        // Predicated region
        $region13: #{tpu_custom_call.1} parent=11 // pred_check
          %p131 = pneg %p62
        $region14: #{tpu_custom_call.1} parent=11 // pred_check_branch
          %133 = sbr.rel (%p131) target = $region16
        $region15: #{tpu_custom_call.1} parent=11 // pred_region
          %135 = vsyncadd [#allocation5], 0
          %s136 = smul.addr %s33, 8
          %s137 = scalar_lea.hbm %s1, %s136
          %s139 = sshll.u32 %s137, 4
          %s140 = int_to_ptr.hbm [resolvable:$true] %s139
          %s141 = sshll.u32 [#allocation4], 4
          %s142 = int_to_ptr.vmem [resolvable:$true] %s141
          %144 = dma.hbm_to_vmem [thread:$0]  %s140, 128, %s142, [#allocation5]
        $region16: #{tpu_custom_call.1} parent=11 // pred_fallthru
          _
      $region12: #{tpu_custom_call.1} parent=5 // pred_fallthru
        _
      %p145 = scmp.lt.s32.totalorder %s24, 2
      // Predicated region
      $region17: #{tpu_custom_call.1} parent=5 // pred_check
        %p146 = pneg %p145
      $region18: #{tpu_custom_call.1} parent=5 // pred_check_branch
        %148 = sbr.rel (%p146) target = $region20
      $region19: #{tpu_custom_call.1} parent=5 // pred_region
        // Predicated region
        $region21: #{tpu_custom_call.1} parent=19 // pred_check
          %p149 = pneg %p82
        $region22: #{tpu_custom_call.1} parent=19 // pred_check_branch
          %151 = sbr.rel (%p149) target = $region24
        $region23: #{tpu_custom_call.1} parent=19 // pred_region
          %s152 = sand.u32 %s72, 1
          %s153 = scalar_lea.sflag [#allocation8], %s152
          %s154 = sand.u32 %s72, 1
          %s155 = scalar_lea.vmem [#allocation7], %s154
          %157 = vsyncadd %s153, 0
          %s158 = scalar_lea.hbm %s2, %s32
          %s160 = sshll.u32 %s158, 4
          %s161 = int_to_ptr.hbm [resolvable:$true] %s160
          %s162 = sshll.u32 %s155, 4
          %s163 = int_to_ptr.vmem [resolvable:$true] %s162
          %165 = dma.hbm_to_vmem [thread:$0]  %s161, 16, %s163, %s153
        $region24: #{tpu_custom_call.1} parent=19 // pred_fallthru
          _
      $region20: #{tpu_custom_call.1} parent=5 // pred_fallthru
        _
      %p166 = scmp.le.s32.totalorder 1, %s24
      %p167 = scmp.lt.s32.totalorder %s24, 3
      %p168 = pnand %p166, %p167
      %p169 = pneg %p168
      // Predicated region
      $region25: #{tpu_custom_call.1} parent=5 // pred_check
        _
      $region26: #{tpu_custom_call.1} parent=5 // pred_check_branch
        %171 = sbr.rel (%p168) target = $region28
      $region27: #{tpu_custom_call.1} parent=5 // pred_region
        %s172 = ssub.s32 %s24, 1
        // Predicated region
        $region29: #{tpu_custom_call.1} parent=27 // pred_check
          %p173 = pneg %p62
        $region30: #{tpu_custom_call.1} parent=27 // pred_check_branch
          %175 = sbr.rel (%p173) target = $region32
        $region31: #{tpu_custom_call.1} parent=27 // pred_region
          %177 = dma.done [#allocation5], 128
        $region32: #{tpu_custom_call.1} parent=27 // pred_fallthru
          _
        %s178 = sand.u32 %s75, 1
        %s179 = scalar_lea.sflag [#allocation8], %s178
        %s180 = sand.u32 %s75, 1
        %s181 = scalar_lea.vmem [#allocation7], %s180
        // Predicated region
        $region33: #{tpu_custom_call.1} parent=27 // pred_check
          %p182 = pneg %p88
        $region34: #{tpu_custom_call.1} parent=27 // pred_check_branch
          %184 = sbr.rel (%p182) target = $region36
        $region35: #{tpu_custom_call.1} parent=27 // pred_region
          %186 = dma.done %s179, 16
        $region36: #{tpu_custom_call.1} parent=27 // pred_fallthru
          _
        %p187 = pneg %p62
        %p188 = pneg %p59
        %s189 = sand.u32 %s75, 1
        %s190 = scalar_lea.sflag [#allocation8], %s189
        %s191 = sand.u32 %s75, 1
        %s192 = scalar_lea.vmem [#allocation7], %s191
        %p193 = pneg %p88
        %p194 = pneg %p85
        %p195 = pneg %p116
        %p196 = pneg %p113
        %s197 = sand.u32 %s103, 1
        %s198 = scalar_lea.sflag [#allocation6], %s197
        %s199 = sand.u32 %s103, 1
        %s200 = smul.addr %s199, 8
        %s201 = scalar_lea.vmem [#allocation9], %s200
        %s202 = smul.u32 %s33, 2
        %s203 = sadd.s32 %s202, %s34
        %s204 = sld [smem:[#allocation3 + %s203]]
        %p205 = scmp.eq.s32.totalorder %s204, 0
        // Predicated region
        $region37: #{tpu_custom_call.1} parent=27 // pred_check
          %p206 = pneg %p205
        $region38: #{tpu_custom_call.1} parent=27 // pred_check_branch
          %208 = sbr.rel (%p206) target = $region40
        $region39: #{tpu_custom_call.1} parent=27 // pred_region
          %209 = vst [vmem:[%s201] sm:$0xff] 0.0
        $region40: #{tpu_custom_call.1} parent=27 // pred_fallthru
          _
        %p210 = scmp.ne.s32.totalorder %s204, 0
        // Predicated region
        $region41: #{tpu_custom_call.1} parent=27 // pred_check
          %p211 = pneg %p210
        $region42: #{tpu_custom_call.1} parent=27 // pred_check_branch
          %213 = sbr.rel (%p211) target = $region44
        $region43: #{tpu_custom_call.1} parent=27 // pred_region
          %s214 = smul.u32 %s34, 128
          %v215 = vlaneseq
          %v216 = vand.u32 %v215, 127
          %v217 = vstv %s214
          %v218 = vadd.s32 %v217, %v216
          %v219 = vld [vmem:[#allocation4] sm:$0xff]
          %220 = vset.pattern.permute.xlu0 0
          %221 = vperm.xlu0 %220, %v219
          %v222 = vpop.permute.xlu0 %221
          %vm223 = vcmp.eq.s32.totalorder %v222, %v218
          %v224 = vsel %vm223, 1, 0
          %225 = vset.pattern.permute.xlu0 1
          %226 = vperm.xlu0 %225, %v219
          %v227 = vpop.permute.xlu0 %226
          %vm228 = vcmp.eq.s32.totalorder %v227, %v218
          %v229 = vsel %vm228, 1, 0
          %v230 = vadd.s32 %v224, %v229
          %231 = vset.pattern.permute.xlu0 2
          %232 = vperm.xlu0 %231, %v219
          %v233 = vpop.permute.xlu0 %232
          %vm234 = vcmp.eq.s32.totalorder %v233, %v218
          %v235 = vsel %vm234, 1, 0
          %v236 = vadd.s32 %v230, %v235
          %237 = vset.pattern.permute.xlu0 3
          %238 = vperm.xlu0 %237, %v219
          %v239 = vpop.permute.xlu0 %238
          %vm240 = vcmp.eq.s32.totalorder %v239, %v218
          %v241 = vsel %vm240, 1, 0
          %v242 = vadd.s32 %v236, %v241
          %243 = vset.pattern.permute.xlu0 4
          %244 = vperm.xlu0 %243, %v219
          %v245 = vpop.permute.xlu0 %244
          %vm246 = vcmp.eq.s32.totalorder %v245, %v218
          %v247 = vsel %vm246, 1, 0
          %v248 = vadd.s32 %v242, %v247
          %249 = vset.pattern.permute.xlu0 5
          %250 = vperm.xlu0 %249, %v219
          %v251 = vpop.permute.xlu0 %250
          %vm252 = vcmp.eq.s32.totalorder %v251, %v218
          %v253 = vsel %vm252, 1, 0
          %v254 = vadd.s32 %v248, %v253
          %255 = vset.pattern.permute.xlu0 6
          %256 = vperm.xlu0 %255, %v219
          %v257 = vpop.permute.xlu0 %256
          %vm258 = vcmp.eq.s32.totalorder %v257, %v218
          %v259 = vsel %vm258, 1, 0
          %v260 = vadd.s32 %v254, %v259
          %261 = vset.pattern.permute.xlu0 7
          %262 = vperm.xlu0 %261, %v219
          %v263 = vpop.permute.xlu0 %262
          %vm264 = vcmp.eq.s32.totalorder %v263, %v218
          %v265 = vsel %vm264, 1, 0
          %v266 = vadd.s32 %v260, %v265
          %v267 = vld [vmem:[%s181] sm:$0x1]
          %v268 = vcvt.s32.f32 %v266
          %v270 = vperm.slane %v267, 0
          %v272 = vmul.f32 %v268, %v270
          %273 = vst [vmem:[%s201] sm:$0xff] %v272
        $region44: #{tpu_custom_call.1} parent=27 // pred_fallthru
          _
        %s274 = sand.u32 %s103, 1
        %s275 = scalar_lea.sflag [#allocation6], %s274
        %s276 = sand.u32 %s103, 1
        %s277 = smul.addr %s276, 8
        %s278 = scalar_lea.vmem [#allocation9], %s277
        // Predicated region
        $region45: #{tpu_custom_call.1} parent=27 // pred_check
          %p279 = pneg %p113
        $region46: #{tpu_custom_call.1} parent=27 // pred_check_branch
          %281 = sbr.rel (%p279) target = $region48
        $region47: #{tpu_custom_call.1} parent=27 // pred_region
          %283 = vsyncadd %s275, 0
          %s284 = smul.addr %s33, 2
          %s285 = sadd.s32 %s34, %s284
          %s286 = smul.addr %s285, 8
          %s287 = scalar_lea.hbm %s3, %s286
          %s289 = sshll.u32 %s278, 4
          %s290 = int_to_ptr.vmem [resolvable:$true] %s289
          %s291 = sshll.u32 %s287, 4
          %s292 = int_to_ptr.hbm [resolvable:$true] %s291
          %294 = dma.vmem_to_hbm [thread:$0]  %s290, 128, %s292, %s275
        $region48: #{tpu_custom_call.1} parent=27 // pred_fallthru
          _
      $region28: #{tpu_custom_call.1} parent=5 // pred_fallthru
        _
      %p295 = scmp.le.s32.totalorder 2, %s24
      // Predicated region
      $region49: #{tpu_custom_call.1} parent=5 // pred_check
        %p296 = pneg %p295
      $region50: #{tpu_custom_call.1} parent=5 // pred_check_branch
        %298 = sbr.rel (%p296) target = $region52
      $region51: #{tpu_custom_call.1} parent=5 // pred_region
        %s299 = ssub.s32 %s24, 2
        // Predicated region
        $region53: #{tpu_custom_call.1} parent=51 // pred_check
          %p300 = pneg %p119
        $region54: #{tpu_custom_call.1} parent=51 // pred_check_branch
          %302 = sbr.rel (%p300) target = $region56
        $region55: #{tpu_custom_call.1} parent=51 // pred_region
          %s303 = sand.u32 %s104, 1
          %s304 = scalar_lea.sflag [#allocation6], %s303
          %s305 = sand.u32 %s104, 1
          %s306 = smul.addr %s305, 8
          %s307 = scalar_lea.vmem [#allocation9], %s306
          %309 = dma.done %s304, 128
        $region56: #{tpu_custom_call.1} parent=51 // pred_fallthru
          _
      $region52: #{tpu_custom_call.1} parent=5 // pred_fallthru
        _
    $region6: #{tpu_custom_call.1} parent=1 // loop_footer
      %s28 = sadd.s32 1, %s24
    $region7: #{tpu_custom_call.1} parent=1 // loop_footer_branch
      %23 = sbr.rel target = $region3
    $region8: #{tpu_custom_call.1} parent=1 // loop_exit
      _
    %310 = vsyncpa [#allocation5], 1
    %s311 = scalar_lea.sflag [#allocation5], 1
    %312 = vsyncpa %s311, 1
    %313 = vsyncpa [#allocation8], 1
    %s314 = scalar_lea.sflag [#allocation8], 1
    %315 = vsyncpa %s314, 1
    %316 = vsyncpa [#allocation6], 1
    %s317 = scalar_lea.sflag [#allocation6], 1
    %318 = vsyncpa %s317, 1

</llo_original>
